<compile_context>
chip_gen: v7x
topology: tpu7x:2x2x1
jax: 0.10.0
libtpu: 0.0.40
codegen_flags: <defaults>
</compile_context>

<pallas_src>
import jax
import jax.numpy as jnp
from jax.experimental import pallas as pl
from jax.experimental.pallas import tpu as pltpu

LANE = 128     # MXU-output feature dims are padded to a multiple of this
SUBLANE = 16   # sublane multiple safe for both f32 (8) and bf16 (16) tiles


def _round_up(x, m):
    return -(-x // m) * m


def _pad2d(a, rows, cols):
    r, c = a.shape
    if r == rows and c == cols:
        return a
    return jnp.pad(a, ((0, rows - r), (0, cols - c)))


def _autoencoder_kernel(x_ref, w1_ref, b1_ref, w2_ref, b2_ref, out_ref, acc_ref):
    """out = relu(x @ W1 + b1) @ W2 + b2, accumulated over hidden-axis grid steps."""
    k = pl.program_id(1)

    @pl.when(k == 0)
    def _init():
        acc_ref[...] = jnp.zeros_like(acc_ref)

    # Matmul-1 on the MXU; x is cast per-tile (no wrapper-side HBM pad/cast pass).
    x = x_ref[...].astype(w1_ref.dtype)
    h = jnp.dot(x, w1_ref[...], preferred_element_type=jnp.float32)
    # Bias + ReLU + single downcast before the second MXU pass.  Exact w.r.t. padding:
    # padded hidden columns have zero weights and zero bias, so they contribute zero.
    h = jnp.maximum(h + b1_ref[...], 0.0).astype(w2_ref.dtype)
    acc_ref[...] += jnp.dot(h, w2_ref[...], preferred_element_type=jnp.float32)

    @pl.when(k == pl.num_programs(1) - 1)
    def _finalize():
        out_ref[...] = (acc_ref[...] + b2_ref[...]).astype(out_ref.dtype)


def autoencoder_forward(x, w1, b1, w2, b2, *, tile_b=None, tile_h=None,
                        compute_dtype=jnp.bfloat16):
    """Forward pass matching the PyTorch Autoencoder.

    x : [B, n_input]
    w1: [n_input, n_hidden]   (transposed vs. nn.Linear's [out, in] storage)
    b1: [n_hidden] or [1, n_hidden]
    w2: [n_hidden, n_output]
    b2: [n_output] or [1, n_output]
    Returns [B, n_output] in x.dtype.

    Note: compute_dtype=bf16 (default) downcasts the MXU operands; accumulation is f32.
    Pass compute_dtype=jnp.float32 for full-precision matmuls.
    """
    B, n_input = x.shape
    n_hidden = w1.shape[1]
    n_output = w2.shape[1]
    out_dtype = x.dtype

    b1 = jnp.asarray(b1).reshape(1, -1)
    b2 = jnp.asarray(b2).reshape(1, -1)

    # Only MXU *output* feature dims are padded to the lane width (lane-dense stores,
    # full MXU columns).  The contraction dim of x (n_input) is not padded: the x / W1
    # blocks use the full-array-dim exception, avoiding padded HBM traffic on x.
    n_hid_p = _round_up(n_hidden, LANE)
    n_out_p = _round_up(n_output, LANE)

    x_bytes = jnp.dtype(x.dtype).itemsize
    w_bytes = jnp.dtype(compute_dtype).itemsize
    o_bytes = jnp.dtype(out_dtype).itemsize

    # ---- batch tile --------------------------------------------------------------
    B_ru = _round_up(B, SUBLANE)
    if tile_b is None:
        tile_b = min(512, B_ru)            # 512-row target (measured pipeline sweet spot)
        nsub = B_ru // SUBLANE
        for steps in (4, 2):               # keep >=4 (>=2) grid steps when batch allows:
            if nsub >= steps:              # pipelined I/O DMA + both v7x TensorCores busy
                tile_b = min(tile_b, (nsub // steps) * SUBLANE)
                break
    tile_b = max(SUBLANE, _round_up(min(int(tile_b), B_ru), SUBLANE))

    # ---- VMEM budget (generation aware) --------------------------------------------
    try:
        vmem_cap = int(pltpu.get_tpu_info().vmem_capacity_bytes)
    except Exception:
        vmem_cap = 64 * 2**20              # conservative: v7x per-TensorCore VMEM
    budget = int(vmem_cap * 0.70)

    def resident_bytes(tb, th):
        wbuf = 1 if th == n_hid_p else 2   # weights double-buffered only when K-tiled
        io = 2 * tb * n_input * x_bytes + 2 * tb * n_out_p * o_bytes   # 2x-buffered I/O
        weights = wbuf * (n_input * th + th * n_out_p) * w_bytes
        biases = wbuf * th * 4 + n_out_p * 4
        h_live = tb * th * 4 + tb * th * w_bytes       # f32 h + compute-dtype copy
        acc = tb * n_out_p * 4                         # f32 accumulator scratch
        return int((io + weights + biases + h_live + acc) * 1.15)  # compiler headroom

    # ---- hidden (K) tile: largest lane-multiple divisor of n_hid_p that fits --------
    n_blocks = n_hid_p // LANE
    divisors = sorted({d for d in range(1, n_blocks + 1) if n_blocks % d == 0},
                      reverse=True)
    if tile_h is None:
        tile_h = LANE
        for d in divisors:
            if resident_bytes(tile_b, d * LANE) <= budget:
                tile_h = d * LANE
                break
    else:
        tile_h = max(LANE, _round_up(min(int(tile_h), n_hid_p), LANE))
        while n_hid_p % tile_h:
            tile_h -= LANE
    # If still over budget, shrink the batch tile as well.
    while tile_b > SUBLANE and resident_bytes(tile_b, tile_h) > budget:
        tile_b = max(SUBLANE, _round_up(tile_b // 2, SUBLANE))

    B_pad = _round_up(B, tile_b)
    grid = (B_pad // tile_b, n_hid_p // tile_h)
    single_k = grid[1] == 1

    # ---- operand prep: no activation copy unless batch padding is actually needed ---
    x_in = x if B_pad == B else jnp.pad(x, ((0, B_pad - B), (0, 0)))
    w1_p = _pad2d(w1, n_input, n_hid_p).astype(compute_dtype)
    w2_p = _pad2d(w2, n_hid_p, n_out_p).astype(compute_dtype)
    b1_p = _pad2d(b1, 1, n_hid_p).astype(jnp.float32)
    b2_p = _pad2d(b2, 1, n_out_p).astype(jnp.float32)

    vmem_limit = int(min(max(resident_bytes(tile_b, tile_h), 32 * 2**20),
                         int(vmem_cap * 0.85)))

    def _call(use_buffered):
        # Block-invariant operands get a single buffer (double-buffering them only
        # wastes VMEM); K-varying weight blocks keep the default double buffer.
        inv = dict(pipeline_mode=pl.Buffered(1)) if use_buffered else {}
        w_mode = inv if single_k else {}
        return pl.pallas_call(
            _autoencoder_kernel,
            out_shape=jax.ShapeDtypeStruct((B_pad, n_out_p), out_dtype),
            grid_spec=pltpu.PrefetchScalarGridSpec(
                num_scalar_prefetch=0,
                grid=grid,
                in_specs=[
                    pl.BlockSpec((tile_b, n_input), lambda i, k: (i, 0)),
                    pl.BlockSpec((n_input, tile_h), lambda i, k: (0, k), **w_mode),
                    pl.BlockSpec((1, tile_h), lambda i, k: (0, k), **w_mode),
                    pl.BlockSpec((tile_h, n_out_p), lambda i, k: (k, 0), **w_mode),
                    pl.BlockSpec((1, n_out_p), lambda i, k: (0, 0), **inv),
                ],
                out_specs=pl.BlockSpec((tile_b, n_out_p), lambda i, k: (i, 0)),
                scratch_shapes=[pltpu.VMEM((tile_b, n_out_p), jnp.float32)],
            ),
            compiler_params=pltpu.CompilerParams(
                dimension_semantics=("parallel", "arbitrary"),
                vmem_limit_bytes=vmem_limit,
            ),
        )(x_in, w1_p, b1_p, w2_p, b2_p)

    try:
        out_p = _call(use_buffered=hasattr(pl, "Buffered"))
    except TypeError:
        # Only for jax versions without BlockSpec(pipeline_mode=...) support.
        out_p = _call(use_buffered=False)

    return out_p[:B, :n_output]


def init_params(key, n_input, n_hidden, n_output, dtype=jnp.float32):
    """Mirror nn.Linear's U(-1/sqrt(fan_in), 1/sqrt(fan_in)) init (weights transposed)."""
    k1, k2, k3, k4 = jax.random.split(key, 4)
    bound1 = 1.0 / jnp.sqrt(n_input)
    bound2 = 1.0 / jnp.sqrt(n_hidden)
    w1 = jax.random.uniform(k1, (n_input, n_hidden), dtype, -bound1, bound1)
    b1 = jax.random.uniform(k2, (1, n_hidden), dtype, -bound1, bound1)
    w2 = jax.random.uniform(k3, (n_hidden, n_output), dtype, -bound2, bound2)
    b2 = jax.random.uniform(k4, (1, n_output), dtype, -bound2, bound2)
    return w1, b1, w2, b2


if __name__ == "__main__":
    key = jax.random.PRNGKey(0)
    k_in, k_params, k_in2, k_params2 = jax.random.split(key, 4)

    # --- small demo config: 4-step batch grid, single hidden step -------------------
    batch, n_input, n_hidden, n_output = 64, 16, 32, 16
    x = jax.random.normal(k_in, (batch, n_input), jnp.float32)
    w1, b1, w2, b2 = init_params(k_params, n_input, n_hidden, n_output)
    ref = jnp.maximum(x @ w1 + b1, 0.0) @ w2 + b2

    # Fast path: bf16 MXU operands, f32 accumulation.
    out_bf16 = jax.block_until_ready(autoencoder_forward(x, w1, b1, w2, b2, tile_b=16))
    assert out_bf16.shape == (batch, n_output)
    assert jnp.allclose(out_bf16, ref, atol=3e-2, rtol=3e-2)

    # f32 path for a tight numerical check.
    out_f32 = jax.block_until_ready(
        autoencoder_forward(x, w1, b1, w2, b2, tile_b=16, compute_dtype=jnp.float32))
    assert jnp.allclose(out_f32, ref, atol=1e-4, rtol=1e-4)

    # --- exercise the hidden-axis (K) tiling path: 2 hidden steps, f32 compute ------
    batch2, n_in2, n_hid2, n_out2 = 32, 24, 256, 40
    x2 = jax.random.normal(k_in2, (batch2, n_in2), jnp.float32)
    w1b, b1b, w2b, b2b = init_params(k_params2, n_in2, n_hid2, n_out2)
    ref2 = jnp.maximum(x2 @ w1b + b1b, 0.0) @ w2b + b2b
    out2 = jax.block_until_ready(
        autoencoder_forward(x2, w1b, b1b, w2b, b2b, tile_h=128,
                            compute_dtype=jnp.float32))
    assert out2.shape == (batch2, n_out2)
    assert jnp.allclose(out2, ref2, atol=1e-4, rtol=1e-4)

    print("KERNEL_OK")
</pallas_src>

<mosaic_0001>
module attributes {stable_mosaic.version = 11 : i64} {
  func.func @_autoencoder_kernel(%arg0: i32, %arg1: i32, %arg2: memref<16x16xf32, #tpu.memory_space<vmem>>, %arg3: memref<16x128xbf16, #tpu.memory_space<vmem>>, %arg4: memref<1x128xf32, #tpu.memory_space<vmem>>, %arg5: memref<128x128xbf16, #tpu.memory_space<vmem>>, %arg6: memref<1x128xf32, #tpu.memory_space<vmem>>, %arg7: memref<16x128xf32, #tpu.memory_space<vmem>>, %arg8: memref<16x128xf32, #tpu.memory_space<vmem>>) attributes {dimension_semantics = [#tpu.dimension_semantics<parallel>, #tpu.dimension_semantics<arbitrary>], iteration_bounds = array<i64: 4, 1>, scalar_prefetch = 0 : i64, scratch_operands = 1 : i64, tpu.core_type = #tpu.core_type<tc>, window_params = [{transform_indices = @transform_0, window_bounds = array<i64: 16, 16>}, {pipeline_mode = #tpu.pipeline_mode<synchronous>, transform_indices = @transform_1, window_bounds = array<i64: 16, 128>}, {pipeline_mode = #tpu.pipeline_mode<synchronous>, transform_indices = @transform_2, window_bounds = array<i64: 1, 128>}, {pipeline_mode = #tpu.pipeline_mode<synchronous>, transform_indices = @transform_3, window_bounds = array<i64: 128, 128>}, {pipeline_mode = #tpu.pipeline_mode<synchronous>, transform_indices = @transform_4, window_bounds = array<i64: 1, 128>}, {transform_indices = @transform_5, window_bounds = array<i64: 16, 128>}]} {
    %c0_i32 = arith.constant 0 : i32
    %0 = arith.cmpi eq, %arg1, %c0_i32 : i32
    %1 = arith.extui %0 : i1 to i32
    %c0_i32_0 = arith.constant 0 : i32
    %2 = arith.cmpi ne, %1, %c0_i32_0 : i32
    scf.if %2 {
      %cst_16 = arith.constant 0.000000e+00 : f32
      %21 = vector.broadcast %cst_16 : f32 to vector<16x128xf32>
      %c0_17 = arith.constant 0 : index
      %c0_18 = arith.constant 0 : index
      %22 = vector.load %arg8[%c0_17, %c0_18] : memref<16x128xf32, #tpu.memory_space<vmem>>, vector<16x128xf32>
      tpu.vector_store %arg8[%c0_17, %c0_18], %21 {strides = array<i32>} : memref<16x128xf32, #tpu.memory_space<vmem>>, vector<16x128xf32>,
    } else {
    }
    %c0 = arith.constant 0 : index
    %c0_1 = arith.constant 0 : index
    %3 = vector.load %arg2[%c0, %c0_1] : memref<16x16xf32, #tpu.memory_space<vmem>>, vector<16x16xf32>
    %4 = arith.truncf %3 : vector<16x16xf32> to vector<16x16xbf16>
    %c0_2 = arith.constant 0 : index
    %c0_3 = arith.constant 0 : index
    %5 = vector.load %arg3[%c0_2, %c0_3] : memref<16x128xbf16, #tpu.memory_space<vmem>>, vector<16x128xbf16>
    %cst = arith.constant dense<0.000000e+00> : vector<16x128xf32>
    %6 = tpu.matmul %4, %5, %cst {dimension_numbers = #tpu.dot_dimension_numbers<[1], [0], [0], [1], [0, 0, 1, 1], [], []>} : vector<16x16xbf16>, vector<16x128xbf16>, vector<16x128xf32> -> vector<16x128xf32>
    %c0_4 = arith.constant 0 : index
    %c0_5 = arith.constant 0 : index
    %7 = vector.load %arg4[%c0_4, %c0_5] : memref<1x128xf32, #tpu.memory_space<vmem>>, vector<1x128xf32>
    %8 = vector.broadcast %7 : vector<1x128xf32> to vector<16x128xf32>
    %9 = arith.addf %6, %8 : vector<16x128xf32>
    %cst_6 = arith.constant 0.000000e+00 : f32
    %10 = vector.broadcast %cst_6 : f32 to vector<16x128xf32>
    %11 = arith.maximumf %9, %10 : vector<16x128xf32>
    %12 = arith.truncf %11 : vector<16x128xf32> to vector<16x128xbf16>
    %c0_7 = arith.constant 0 : index
    %c0_8 = arith.constant 0 : index
    %13 = vector.load %arg8[%c0_7, %c0_8] : memref<16x128xf32, #tpu.memory_space<vmem>>, vector<16x128xf32>
    %c0_9 = arith.constant 0 : index
    %c0_10 = arith.constant 0 : index
    %14 = vector.load %arg5[%c0_9, %c0_10] : memref<128x128xbf16, #tpu.memory_space<vmem>>, vector<128x128xbf16>
    %cst_11 = arith.constant dense<0.000000e+00> : vector<16x128xf32>
    %15 = tpu.matmul %12, %14, %cst_11 {dimension_numbers = #tpu.dot_dimension_numbers<[1], [0], [0], [1], [0, 0, 1, 1], [], []>} : vector<16x128xbf16>, vector<128x128xbf16>, vector<16x128xf32> -> vector<16x128xf32>
    %16 = arith.addf %13, %15 : vector<16x128xf32>
    %c0_12 = arith.constant 0 : index
    %c0_13 = arith.constant 0 : index
    %17 = vector.load %arg8[%c0_12, %c0_13] : memref<16x128xf32, #tpu.memory_space<vmem>>, vector<16x128xf32>
    tpu.vector_store %arg8[%c0_12, %c0_13], %16 {strides = array<i32>} : memref<16x128xf32, #tpu.memory_space<vmem>>, vector<16x128xf32>,
    %c0_i32_14 = arith.constant 0 : i32
    %18 = arith.cmpi eq, %arg1, %c0_i32_14 : i32
    %19 = arith.extui %18 : i1 to i32
    %c0_i32_15 = arith.constant 0 : i32
    %20 = arith.cmpi ne, %19, %c0_i32_15 : i32
    scf.if %20 {
      %c0_16 = arith.constant 0 : index
      %c0_17 = arith.constant 0 : index
      %21 = vector.load %arg8[%c0_16, %c0_17] : memref<16x128xf32, #tpu.memory_space<vmem>>, vector<16x128xf32>
      %c0_18 = arith.constant 0 : index
      %c0_19 = arith.constant 0 : index
      %22 = vector.load %arg6[%c0_18, %c0_19] : memref<1x128xf32, #tpu.memory_space<vmem>>, vector<1x128xf32>
      %23 = vector.broadcast %22 : vector<1x128xf32> to vector<16x128xf32>
      %24 = arith.addf %21, %23 : vector<16x128xf32>
      %c0_20 = arith.constant 0 : index
      %c0_21 = arith.constant 0 : index
      %25 = vector.load %arg7[%c0_20, %c0_21] : memref<16x128xf32, #tpu.memory_space<vmem>>, vector<16x128xf32>
      tpu.vector_store %arg7[%c0_20, %c0_21], %24 {strides = array<i32>} : memref<16x128xf32, #tpu.memory_space<vmem>>, vector<16x128xf32>,
    } else {
    }
    return
  }
  func.func @transform_0(%arg0: i32, %arg1: i32) -> (i32, i32) {
    %c0_i32 = arith.constant 0 : i32
    %c0_i32_0 = arith.constant 0 : i32
    return %arg0, %c0_i32 : i32, i32
  }
  func.func @transform_1(%arg0: i32, %arg1: i32) -> (i32, i32) {
    %c0_i32 = arith.constant 0 : i32
    %c0_i32_0 = arith.constant 0 : i32
    return %c0_i32, %arg1 : i32, i32
  }
  func.func @transform_2(%arg0: i32, %arg1: i32) -> (i32, i32) {
    %c0_i32 = arith.constant 0 : i32
    %c0_i32_0 = arith.constant 0 : i32
    return %c0_i32, %arg1 : i32, i32
  }
  func.func @transform_3(%arg0: i32, %arg1: i32) -> (i32, i32) {
    %c0_i32 = arith.constant 0 : i32
    %c0_i32_0 = arith.constant 0 : i32
    return %arg1, %c0_i32 : i32, i32
  }
  func.func @transform_4(%arg0: i32, %arg1: i32) -> (i32, i32) {
    %c0_i32 = arith.constant 0 : i32
    %c0_i32_0 = arith.constant 0 : i32
    %c0_i32_1 = arith.constant 0 : i32
    return %c0_i32, %c0_i32_0 : i32, i32
  }
  func.func @transform_5(%arg0: i32, %arg1: i32) -> (i32, i32) {
    %c0_i32 = arith.constant 0 : i32
    %c0_i32_0 = arith.constant 0 : i32
    return %arg0, %c0_i32 : i32, i32
  }
}

</mosaic_0001>

<llo_original>
// kernel: tpu_custom_call.1
$region0: #{tpu_custom_call.1}
  #allocation0 [shape = 'u32[]', space=smem, size = 0x4, offset = 0x4, fixed_abs, tag = 'smem constant byte address 0x4 - core index']
  #allocation1 [shape = 'u32[144,128]{1,0:T(1,128)}', space=vmem, size = 0x12000, scoped, tag = 'internal scratch']
  #allocation2 [shape = 'f32[16,128]{1,0:T(8,128)}', space=vmem, size = 0x2000, scoped, tag = 'scratch operand']
  %s0 = inlined_call_operand.vmem [shape: f32[64,16], index: 0, kind: input, shape index: {}]
  %s1 = inlined_call_operand.vmem [shape: bf16[16,128], index: 1, kind: input, shape index: {}]
  %s2 = inlined_call_operand.vmem [shape: f32[1,128], index: 2, kind: input, shape index: {}]
  %s3 = inlined_call_operand.vmem [shape: bf16[128,128], index: 3, kind: input, shape index: {}]
  %s4 = inlined_call_operand.vmem [shape: f32[1,128], index: 4, kind: input, shape index: {}]
  %s5 = inlined_call_operand.hbm [shape: f32[64,128], index: 5, kind: output, shape index: {}]
  %s6 = sld [smem:[#allocation0]]
  $region61: #{tpu_custom_call.1} parent=0
    _
  %s8 = ssub.s32 1, %s6
  %s9 = scalar_select 0, %s8, %s6
  $region1: #{tpu_custom_call.1} parent=0
    #allocation3 [shape = 'u8[16384]{0}', space=vmem, size = 0x4000, scoped, tag = 'output window, operand 0']
    #allocation4 [shape = 's32[2]{0}', space=sflag, size = 0x8, scoped, tag = 'scoped memory for tpu_custom_call.1']
    %10 = vsyncpa [#allocation4], 0
    %s11 = scalar_lea.sflag [#allocation4], 1
    %12 = vsyncpa %s11, 0
    loop: start=0, step=1, limit=6
    $region2: #{tpu_custom_call.1} parent=1 // loop_pre_header
      _
    $region3: #{tpu_custom_call.1} parent=1 // loop_header
      %s14 = sphi 0, %s18
      %p15 = scmp.ge.s32.totalorder %s14, 6
      %s21 = sphi 0, %s33
      %s22 = sphi 0, %s29
      %s23 = sphi 0, %s21
      %s24 = sphi 0, %s22
      %s25 = sphi 0, %s23
      %s26 = sphi 0, %s24
      %s36 = sphi 0, %s38
      %s39 = sphi 0, %s36
      %s40 = sphi 0, %s39
      %s56 = sphi 0, %s40
      %s62 = sphi 0, %s64
      %s65 = sphi 0, %s62
      %s66 = sphi 0, %s65
      %s82 = sphi 0, %s66
      %s88 = sphi 0, %s90
      %s91 = sphi 0, %s88
      %s92 = sphi 0, %s91
      %s108 = sphi 0, %s92
      %s114 = sphi 0, %s116
      %s117 = sphi 0, %s114
      %s118 = sphi 0, %s117
      %s134 = sphi 0, %s118
      %s138 = sphi 0, %s138
      %s140 = sphi 0, %s138
      %s141 = sphi 0, %s140
      %s155 = sphi 0, %s141
      %s161 = sphi 0, %s163
      %s164 = sphi 0, %s161
      %s165 = sphi 0, %s164
      %s181 = sphi 0, %s165
    $region4: #{tpu_custom_call.1} parent=1 // loop_header_branch
      %17 = sbr.rel (%p15) target = $region8
    $region5: #{tpu_custom_call.1} parent=1 // loop_body
      %s19 = ssub.s32 %s14, 1
      %s20 = ssub.s32 %s14, 2
      %s27 = sadd.s32 1, %s22
      %p28 = scmp.ge.s32.totalorder %s27, 1
      %s29 = scalar_select %p28, 0, %s27
      %s30 = sadd.s32 1, %s21
      %s31 = scalar_select %p28, %s30, %s21
      %p32 = scmp.ge.s32.totalorder %s31, 4
      %s33 = scalar_select %p32, 0, %s31
      %s34 = ssub.s32 %s21, %s33
      %p35 = scmp.eq.s32.totalorder %s34, 0
      %s37 = sadd.s32 %s36, 1
      %s38 = scalar_select %p35, %s36, %s37
      %p41 = pneg %p35
      %p42 = scmp.eq.s32.totalorder %s14, 3
      %p43 = por %p41, %p42
      %p44 = scmp.ne.s32.totalorder %s36, %s39
      %p45 = scmp.eq.s32.totalorder %s14, 0
      %p46 = por %p44, %p45
      %p47 = scmp.ne.s32.totalorder %s36, %s39
      %p48 = scmp.eq.s32.totalorder %s19, 3
      %p49 = por %p47, %p48
      %p50 = scmp.ne.s32.totalorder %s39, %s40
      %p51 = scmp.eq.s32.totalorder %s19, 0
      %p52 = por %p50, %p51
      %p53 = scmp.ne.s32.totalorder %s39, %s40
      %p54 = scmp.eq.s32.totalorder %s20, 3
      %p55 = por %p53, %p54
      %p57 = scmp.ne.s32.totalorder %s40, %s56
      %p58 = scmp.eq.s32.totalorder %s20, 0
      %p59 = por %p57, %p58
      %s60 = ssub.s32 %s22, %s29
      %p61 = scmp.eq.s32.totalorder %s60, 0
      %s63 = sadd.s32 %s62, 1
      %s64 = scalar_select %p61, %s62, %s63
      %p67 = pneg %p61
      %p68 = scmp.eq.s32.totalorder %s14, 3
      %p69 = por %p67, %p68
      %p70 = scmp.ne.s32.totalorder %s62, %s65
      %p71 = scmp.eq.s32.totalorder %s14, 0
      %p72 = por %p70, %p71
      %p73 = scmp.ne.s32.totalorder %s62, %s65
      %p74 = scmp.eq.s32.totalorder %s19, 3
      %p75 = por %p73, %p74
      %p76 = scmp.ne.s32.totalorder %s65, %s66
      %p77 = scmp.eq.s32.totalorder %s19, 0
      %p78 = por %p76, %p77
      %p79 = scmp.ne.s32.totalorder %s65, %s66
      %p80 = scmp.eq.s32.totalorder %s20, 3
      %p81 = por %p79, %p80
      %p83 = scmp.ne.s32.totalorder %s66, %s82
      %p84 = scmp.eq.s32.totalorder %s20, 0
      %p85 = por %p83, %p84
      %s86 = ssub.s32 %s22, %s29
      %p87 = scmp.eq.s32.totalorder %s86, 0
      %s89 = sadd.s32 %s88, 1
      %s90 = scalar_select %p87, %s88, %s89
      %p93 = pneg %p87
      %p94 = scmp.eq.s32.totalorder %s14, 3
      %p95 = por %p93, %p94
      %p96 = scmp.ne.s32.totalorder %s88, %s91
      %p97 = scmp.eq.s32.totalorder %s14, 0
      %p98 = por %p96, %p97
      %p99 = scmp.ne.s32.totalorder %s88, %s91
      %p100 = scmp.eq.s32.totalorder %s19, 3
      %p101 = por %p99, %p100
      %p102 = scmp.ne.s32.totalorder %s91, %s92
      %p103 = scmp.eq.s32.totalorder %s19, 0
      %p104 = por %p102, %p103
      %p105 = scmp.ne.s32.totalorder %s91, %s92
      %p106 = scmp.eq.s32.totalorder %s20, 3
      %p107 = por %p105, %p106
      %p109 = scmp.ne.s32.totalorder %s92, %s108
      %p110 = scmp.eq.s32.totalorder %s20, 0
      %p111 = por %p109, %p110
      %s112 = ssub.s32 %s22, %s29
      %p113 = scmp.eq.s32.totalorder %s112, 0
      %s115 = sadd.s32 %s114, 1
      %s116 = scalar_select %p113, %s114, %s115
      %p119 = pneg %p113
      %p120 = scmp.eq.s32.totalorder %s14, 3
      %p121 = por %p119, %p120
      %p122 = scmp.ne.s32.totalorder %s114, %s117
      %p123 = scmp.eq.s32.totalorder %s14, 0
      %p124 = por %p122, %p123
      %p125 = scmp.ne.s32.totalorder %s114, %s117
      %p126 = scmp.eq.s32.totalorder %s19, 3
      %p127 = por %p125, %p126
      %p128 = scmp.ne.s32.totalorder %s117, %s118
      %p129 = scmp.eq.s32.totalorder %s19, 0
      %p130 = por %p128, %p129
      %p131 = scmp.ne.s32.totalorder %s117, %s118
      %p132 = scmp.eq.s32.totalorder %s20, 3
      %p133 = por %p131, %p132
      %p135 = scmp.ne.s32.totalorder %s118, %s134
      %p136 = scmp.eq.s32.totalorder %s20, 0
      %p137 = por %p135, %p136
      %s139 = sadd.s32 %s138, 1
      %p142 = scmp.eq.s32.totalorder %s14, 3
      %p143 = scmp.ne.s32.totalorder %s138, %s140
      %p144 = scmp.eq.s32.totalorder %s14, 0
      %p145 = por %p143, %p144
      %p146 = scmp.ne.s32.totalorder %s138, %s140
      %p147 = scmp.eq.s32.totalorder %s19, 3
      %p148 = por %p146, %p147
      %p149 = scmp.ne.s32.totalorder %s140, %s141
      %p150 = scmp.eq.s32.totalorder %s19, 0
      %p151 = por %p149, %p150
      %p152 = scmp.ne.s32.totalorder %s140, %s141
      %p153 = scmp.eq.s32.totalorder %s20, 3
      %p154 = por %p152, %p153
      %p156 = scmp.ne.s32.totalorder %s141, %s155
      %p157 = scmp.eq.s32.totalorder %s20, 0
      %p158 = por %p156, %p157
      %s159 = ssub.s32 %s21, %s33
      %p160 = scmp.eq.s32.totalorder %s159, 0
      %s162 = sadd.s32 %s161, 1
      %s163 = scalar_select %p160, %s161, %s162
      %p166 = pneg %p160
      %p167 = scmp.eq.s32.totalorder %s14, 3
      %p168 = por %p166, %p167
      %p169 = scmp.ne.s32.totalorder %s161, %s164
      %p170 = scmp.eq.s32.totalorder %s14, 0
      %p171 = por %p169, %p170
      %p172 = scmp.ne.s32.totalorder %s161, %s164
      %p173 = scmp.eq.s32.totalorder %s19, 3
      %p174 = por %p172, %p173
      %p175 = scmp.ne.s32.totalorder %s164, %s165
      %p176 = scmp.eq.s32.totalorder %s19, 0
      %p177 = por %p175, %p176
      %p178 = scmp.ne.s32.totalorder %s164, %s165
      %p179 = scmp.eq.s32.totalorder %s20, 3
      %p180 = por %p178, %p179
      %p182 = scmp.ne.s32.totalorder %s165, %s181
      %p183 = scmp.eq.s32.totalorder %s20, 0
      %p184 = por %p182, %p183
      %p185 = scmp.le.s32.totalorder 1, %s14
      %p186 = scmp.lt.s32.totalorder %s14, 5
      %p187 = pnand %p185, %p186
      %p188 = pneg %p187
      // Predicated region
      $region9: #{tpu_custom_call.1} parent=5 // pred_check
        _
      $region10: #{tpu_custom_call.1} parent=5 // pred_check_branch
        %190 = sbr.rel (%p187) target = $region12
      $region11: #{tpu_custom_call.1} parent=5 // pred_region
        %s191 = ssub.s32 %s14, 1
        // Predicated region
        $region13: #{tpu_custom_call.1} parent=11 // pred_check
          %p192 = pneg %p78
        $region14: #{tpu_custom_call.1} parent=11 // pred_check_branch
          %194 = sbr.rel (%p192) target = $region16
        $region15: #{tpu_custom_call.1} parent=11 // pred_region
          %p195 = scmp.lt.s32.totalorder %s24, 0
          %s196 = scalar_select %p195, %s24, 0
          %s197 = smul.addr %s196, 4
          %s198 = scalar_lea.vmem %s1, %s197
        $region16: #{tpu_custom_call.1} parent=11 // pred_fallthru
          _
        // Predicated region
        $region17: #{tpu_custom_call.1} parent=11 // pred_check
          %p199 = pneg %p104
        $region18: #{tpu_custom_call.1} parent=11 // pred_check_branch
          %201 = sbr.rel (%p199) target = $region20
        $region19: #{tpu_custom_call.1} parent=11 // pred_region
          %p202 = scmp.lt.s32.totalorder %s24, 0
          %s203 = scalar_select %p202, %s24, 0
          %s204 = scalar_lea.vmem %s2, %s203
        $region20: #{tpu_custom_call.1} parent=11 // pred_fallthru
          _
        // Predicated region
        $region21: #{tpu_custom_call.1} parent=11 // pred_check
          %p205 = pneg %p130
        $region22: #{tpu_custom_call.1} parent=11 // pred_check_branch
          %207 = sbr.rel (%p205) target = $region24
        $region23: #{tpu_custom_call.1} parent=11 // pred_region
          %s208 = smul.u32 16, %s24
          %p209 = scmp.lt.s32.totalorder %s208, 15
          %s210 = scalar_select %p209, %s208, 15
          %s211 = smul.addr %s210, 4
          %s212 = scalar_lea.vmem %s3, %s211
          %s213 = smul.u32 16, %s24
        $region24: #{tpu_custom_call.1} parent=11 // pred_fallthru
          _
        // Predicated region
        $region25: #{tpu_custom_call.1} parent=11 // pred_check
          %p214 = pneg %p151
        $region26: #{tpu_custom_call.1} parent=11 // pred_check_branch
          %216 = sbr.rel (%p214) target = $region28
        $region27: #{tpu_custom_call.1} parent=11 // pred_region
          _
        $region28: #{tpu_custom_call.1} parent=11 // pred_fallthru
          _
      $region12: #{tpu_custom_call.1} parent=5 // pred_fallthru
        _
      %p217 = scmp.lt.s32.totalorder %s14, 4
      // Predicated region
      $region29: #{tpu_custom_call.1} parent=5 // pred_check
        %p218 = pneg %p217
      $region30: #{tpu_custom_call.1} parent=5 // pred_check_branch
        %220 = sbr.rel (%p218) target = $region32
      $region31: #{tpu_custom_call.1} parent=5 // pred_region
        // Predicated region
        $region33: #{tpu_custom_call.1} parent=31 // pred_check
          %p221 = pneg %p46
        $region34: #{tpu_custom_call.1} parent=31 // pred_check_branch
          %223 = sbr.rel (%p221) target = $region36
        $region35: #{tpu_custom_call.1} parent=31 // pred_region
          %s224 = smul.u32 2, %s21
          %p225 = scmp.lt.s32.totalorder %s224, 7
          %s226 = scalar_select %p225, %s224, 7
          %s227 = smul.addr %s226, 8
          %s228 = scalar_lea.vmem %s0, %s227
          %s229 = smul.u32 2, %s21
        $region36: #{tpu_custom_call.1} parent=31 // pred_fallthru
          _
      $region32: #{tpu_custom_call.1} parent=5 // pred_fallthru
        _
      %p230 = scmp.le.s32.totalorder 1, %s14
      %p231 = scmp.lt.s32.totalorder %s14, 5
      %p232 = pnand %p230, %p231
      %p233 = pneg %p232
      // Predicated region
      $region37: #{tpu_custom_call.1} parent=5 // pred_check
        _
      $region38: #{tpu_custom_call.1} parent=5 // pred_check_branch
        %235 = sbr.rel (%p232) target = $region40
      $region39: #{tpu_custom_call.1} parent=5 // pred_region
        %s236 = ssub.s32 %s14, 1
        %s237 = smul.u32 2, %s23
        %p238 = scmp.lt.s32.totalorder %s237, 7
        %s239 = scalar_select %p238, %s237, 7
        %s240 = smul.addr %s239, 8
        %s241 = scalar_lea.vmem %s0, %s240
        %p242 = pneg %p52
        %p243 = pneg %p49
        %p244 = scmp.lt.s32.totalorder %s24, 0
        %s245 = scalar_select %p244, %s24, 0
        %s246 = smul.addr %s245, 4
        %s247 = scalar_lea.vmem %s1, %s246
        %p248 = pneg %p78
        %p249 = pneg %p75
        %p250 = scmp.lt.s32.totalorder %s24, 0
        %s251 = scalar_select %p250, %s24, 0
        %s252 = scalar_lea.vmem %s2, %s251
        %p253 = pneg %p104
        %p254 = pneg %p101
        %s255 = smul.u32 16, %s24
        %p256 = scmp.lt.s32.totalorder %s255, 15
        %s257 = scalar_select %p256, %s255, 15
        %s258 = smul.addr %s257, 4
        %s259 = scalar_lea.vmem %s3, %s258
        %p260 = pneg %p130
        %p261 = pneg %p127
        %p262 = pneg %p151
        %p263 = pneg %p148
        %p264 = pneg %p177
        %p265 = pneg %p174
        %s266 = sand.u32 %s164, 1
        %s267 = scalar_lea.sflag [#allocation4], %s266
        %s268 = sand.u32 %s164, 1
        %s269 = smul.addr %s268, 16
        %s270 = scalar_lea.vmem [#allocation3], %s269
        %s271 = smul.u32 2, %s23
        %p272 = scmp.lt.s32.totalorder %s271, 7
        %s273 = scalar_select %p272, %s271, 7
        %s274 = smul.addr %s273, 8
        %s275 = scalar_lea.vmem %s0, %s274
        %s276 = smul.u32 2, %s23
        %p277 = scmp.lt.s32.totalorder %s24, 0
        %s278 = scalar_select %p277, %s24, 0
        %s279 = smul.addr %s278, 4
        %s280 = scalar_lea.vmem %s1, %s279
        %p281 = scmp.lt.s32.totalorder %s24, 0
        %s282 = scalar_select %p281, %s24, 0
        %s283 = scalar_lea.vmem %s2, %s282
        %s284 = smul.u32 16, %s24
        %p285 = scmp.lt.s32.totalorder %s284, 15
        %s286 = scalar_select %p285, %s284, 15
        %s287 = smul.addr %s286, 4
        %s288 = scalar_lea.vmem %s3, %s287
        %s289 = smul.u32 16, %s24
        %s290 = smul.u32 2, %s23
        %p292 = scmp.eq.s32.totalorder %s24, 0
        // Predicated region
        $region41: #{tpu_custom_call.1} parent=39 // pred_check
          %p293 = pneg %p292
        $region42: #{tpu_custom_call.1} parent=39 // pred_check_branch
          %295 = sbr.rel (%p293) target = $region44
        $region43: #{tpu_custom_call.1} parent=39 // pred_region
          %296 = vst [vmem:[#allocation2] sm:$0xff] 0.0
          %297 = vst [vmem:[#allocation2 + $0x8] sm:$0xff] 0.0
        $region44: #{tpu_custom_call.1} parent=39 // pred_fallthru
          _
        %v298 = vld [vmem:[%s275] sm:$0xff]
        %v299 = vld [vmem:[%s275 + $0x8] sm:$0xff]
        %v300 = vpack.c.bf16 %v299, %v298
        %v301 = vld [vmem:[%s280] sm:$0xf]
        %v302 = vld [vmem:[%s280 + $0x4] sm:$0xf]
        %v303 = vld [vmem:[%s283] sm:$0x1]
        %v305 = vlaneseq
        %v306 = vshrl.u32 %v305, 7
        %v307 = vsub.s32 0, %v306
        %v308 = vrot.slane %v303, %v307
        %v312 = vunpack.c.l.b16 %v301
        %v313 = vunpack.c.l.b16 %v302
        %v314 = vpack.c.b16 %v313, %v312
        %vm316 = vcmask 130048
        %v318 = vsel %vm316, %v300, 0
        %320 = vmatprep.subr.bf16.mxu0 0
        %321 = vmatpush1.bf16.msra.mxu0 %v314
        %322 = vmatprep.subr.bf16.mxu0 0
        %323 = vmatpush1.bf16.msra.mxu0 0
        %324 = vmatprep.subr.bf16.mxu0 0
        %325 = vmatpush1.bf16.msra.mxu0 0
        %326 = vmatprep.subr.bf16.mxu0 0
        %327 = vmatpush1.bf16.msra.mxu0 0
        %328 = vmatprep.subr.bf16.mxu0 0
        %329 = vmatpush1.bf16.msra.mxu0 0
        %330 = vmatprep.subr.bf16.mxu0 0
        %331 = vmatpush1.bf16.msra.mxu0 0
        %332 = vmatprep.subr.bf16.mxu0 0
        %333 = vmatpush1.bf16.msra.mxu0 0
        %334 = vmatprep.subr.bf16.mxu0 0
        %335 = vmatpush1.bf16.msra.mxu0 0
        %336 = vmatprep.subr.bf16.mxu0 0
        %337 = vmatpush1.bf16.msra.mxu0 0
        %338 = vmatprep.subr.bf16.mxu0 0
        %339 = vmatpush1.bf16.msra.mxu0 0
        %340 = vmatprep.subr.bf16.mxu0 0
        %341 = vmatpush1.bf16.msra.mxu0 0
        %342 = vmatprep.subr.bf16.mxu0 0
        %343 = vmatpush1.bf16.msra.mxu0 0
        %344 = vmatprep.subr.bf16.mxu0 0
        %345 = vmatpush1.bf16.msra.mxu0 0
        %346 = vmatprep.subr.bf16.mxu0 0
        %347 = vmatpush1.bf16.msra.mxu0 0
        %348 = vmatprep.subr.bf16.mxu0 0
        %349 = vmatpush1.bf16.msra.mxu0 0
        %350 = vmatprep.subr.bf16.mxu0 0
        %351 = vmatpush1.bf16.msra.mxu0 0
        %352 = vmatprep.mubr.bf16.mxu0 0
        %353 = vmatmul.mubr.bf16.gmra.mrb[0].mxu0 %v318
        %v354 = vpop.f32.mrb[0].mxu0
        %v355 = vadd.f32 %v308, %v354
        %v356 = vpop.f32.mrb[0].mxu0
        %v357 = vpop.f32.mrb[0].mxu0
        %v358 = vadd.f32 %v308, %v357
        %v359 = vpop.f32.mrb[0].mxu0
        %360 = vdwg.mxu0
        %v361 = vmax.f32 %v355, 0.0
        %v362 = vmax.f32 %v358, 0.0
        %v363 = vpack.c.bf16 %v362, %v361
        %v364 = vld [vmem:[#allocation2] sm:$0xff]
        %v365 = vld [vmem:[#allocation2 + $0x8] sm:$0xff]
        %v366 = vld [vmem:[%s288] sm:$0xf]
        %v367 = vld [vmem:[%s288 + $0x4] sm:$0xf]
        %v368 = vld [vmem:[%s288 + $0x8] sm:$0xf]
        %v369 = vld [vmem:[%s288 + $0xc] sm:$0xf]
        %v370 = vld [vmem:[%s288 + $0x10] sm:$0xf]
        %v371 = vld [vmem:[%s288 + $0x14] sm:$0xf]
        %v372 = vld [vmem:[%s288 + $0x18] sm:$0xf]
        %v373 = vld [vmem:[%s288 + $0x1c] sm:$0xf]
        %v374 = vld [vmem:[%s288 + $0x20] sm:$0xf]
        %v375 = vld [vmem:[%s288 + $0x24] sm:$0xf]
        %v376 = vld [vmem:[%s288 + $0x28] sm:$0xf]
        %v377 = vld [vmem:[%s288 + $0x2c] sm:$0xf]
        %v378 = vld [vmem:[%s288 + $0x30] sm:$0xf]
        %v379 = vld [vmem:[%s288 + $0x34] sm:$0xf]
        %v380 = vld [vmem:[%s288 + $0x38] sm:$0xf]
        %v381 = vld [vmem:[%s288 + $0x3c] sm:$0xf]
        %v398 = vunpack.c.l.b16 %v366
        %v399 = vunpack.c.l.b16 %v367
        %v400 = vunpack.c.l.b16 %v368
        %v401 = vunpack.c.l.b16 %v369
        %v402 = vunpack.c.l.b16 %v370
        %v403 = vunpack.c.l.b16 %v371
        %v404 = vunpack.c.l.b16 %v372
        %v405 = vunpack.c.l.b16 %v373
        %v406 = vunpack.c.l.b16 %v374
        %v407 = vunpack.c.l.b16 %v375
        %v408 = vunpack.c.l.b16 %v376
        %v409 = vunpack.c.l.b16 %v377
        %v410 = vunpack.c.l.b16 %v378
        %v411 = vunpack.c.l.b16 %v379
        %v412 = vunpack.c.l.b16 %v380
        %v413 = vunpack.c.l.b16 %v381
        %v414 = vpack.c.b16 %v399, %v398
        %v415 = vpack.c.b16 %v401, %v400
        %v416 = vpack.c.b16 %v403, %v402
        %v417 = vpack.c.b16 %v405, %v404
        %v418 = vpack.c.b16 %v407, %v406
        %v419 = vpack.c.b16 %v409, %v408
        %v420 = vpack.c.b16 %v411, %v410
        %v421 = vpack.c.b16 %v413, %v412
        %430 = vmatprep.subr.bf16.mxu0 0
        %431 = vmatpush1.bf16.msra.mxu0 %v414
        %432 = vmatprep.subr.bf16.mxu0 0
        %433 = vmatpush1.bf16.msra.mxu0 %v415
        %434 = vmatprep.subr.bf16.mxu0 0
        %435 = vmatpush1.bf16.msra.mxu0 %v416
        %436 = vmatprep.subr.bf16.mxu0 0
        %437 = vmatpush1.bf16.msra.mxu0 %v417
        %438 = vmatprep.subr.bf16.mxu0 0
        %439 = vmatpush1.bf16.msra.mxu0 %v418
        %440 = vmatprep.subr.bf16.mxu0 0
        %441 = vmatpush1.bf16.msra.mxu0 %v419
        %442 = vmatprep.subr.bf16.mxu0 0
        %443 = vmatpush1.bf16.msra.mxu0 %v420
        %444 = vmatprep.subr.bf16.mxu0 0
        %445 = vmatpush1.bf16.msra.mxu0 %v421
        %446 = vmatprep.subr.bf16.mxu0 0
        %447 = vmatpush1.bf16.msra.mxu0 0
        %448 = vmatprep.subr.bf16.mxu0 0
        %449 = vmatpush1.bf16.msra.mxu0 0
        %450 = vmatprep.subr.bf16.mxu0 0
        %451 = vmatpush1.bf16.msra.mxu0 0
        %452 = vmatprep.subr.bf16.mxu0 0
        %453 = vmatpush1.bf16.msra.mxu0 0
        %454 = vmatprep.subr.bf16.mxu0 0
        %455 = vmatpush1.bf16.msra.mxu0 0
        %456 = vmatprep.subr.bf16.mxu0 0
        %457 = vmatpush1.bf16.msra.mxu0 0
        %458 = vmatprep.subr.bf16.mxu0 0
        %459 = vmatpush1.bf16.msra.mxu0 0
        %460 = vmatprep.subr.bf16.mxu0 0
        %461 = vmatpush1.bf16.msra.mxu0 0
        %462 = vmatprep.mubr.bf16.mxu0 0
        %463 = vmatmul.mubr.bf16.gmra.mrb[0].mxu0 %v363
        %v464 = vpop.f32.mrb[0].mxu0
        %v465 = vadd.f32 0.0, %v464
        %v466 = vpop.f32.mrb[0].mxu0
        %v467 = vpop.f32.mrb[0].mxu0
        %v468 = vadd.f32 0.0, %v467
        %v469 = vpop.f32.mrb[0].mxu0
        %470 = vdwg.mxu0
        %v471 = vadd.f32 %v364, %v465
        %v472 = vadd.f32 %v365, %v468
        %473 = vst [vmem:[#allocation2] sm:$0xff] %v471
        %474 = vst [vmem:[#allocation2 + $0x8] sm:$0xff] %v472
        // Predicated region
        $region45: #{tpu_custom_call.1} parent=39 // pred_check
          %p475 = pneg %p292
        $region46: #{tpu_custom_call.1} parent=39 // pred_check_branch
          %477 = sbr.rel (%p475) target = $region48
        $region47: #{tpu_custom_call.1} parent=39 // pred_region
          %v478 = vld [vmem:[#allocation2] sm:$0xff]
          %v479 = vld [vmem:[#allocation2 + $0x8] sm:$0xff]
          %v480 = vld [vmem:[%s4] sm:$0x1]
          %v482 = vlaneseq
          %v483 = vshrl.u32 %v482, 7
          %v484 = vsub.s32 0, %v483
          %v485 = vrot.slane %v480, %v484
          %v487 = vadd.f32 %v478, %v485
          %v488 = vadd.f32 %v479, %v485
          %489 = vst [vmem:[%s270] sm:$0xff] %v487
          %490 = vst [vmem:[%s270 + $0x8] sm:$0xff] %v488
        $region48: #{tpu_custom_call.1} parent=39 // pred_fallthru
          _
        %s491 = sand.u32 %s164, 1
        %s492 = scalar_lea.sflag [#allocation4], %s491
        %s493 = sand.u32 %s164, 1
        %s494 = smul.addr %s493, 16
        %s495 = scalar_lea.vmem [#allocation3], %s494
        // Predicated region
        $region49: #{tpu_custom_call.1} parent=39 // pred_check
          %p496 = pneg %p174
        $region50: #{tpu_custom_call.1} parent=39 // pred_check_branch
          %498 = sbr.rel (%p496) target = $region52
        $region51: #{tpu_custom_call.1} parent=39 // pred_region
          %s499 = smul.u32 2, %s23
          %s501 = ssub.s32 256, 256
          %502 = vsyncadd %s492, %s501
          %s503 = smul.addr %s499, 128
          %s504 = scalar_lea.hbm %s5, %s503
          %s505 = sshll.u32 %s495, 4
          %s506 = int_to_ptr.vmem [resolvable:$true] %s505
          %511 = dma.vmem_to_hbm [thread:$0]  %s506, 256, %s504, %s492, 128, 128, 8
        $region52: #{tpu_custom_call.1} parent=39 // pred_fallthru
          _
      $region40: #{tpu_custom_call.1} parent=5 // pred_fallthru
        _
      %p512 = scmp.le.s32.totalorder 2, %s14
      // Predicated region
      $region53: #{tpu_custom_call.1} parent=5 // pred_check
        %p513 = pneg %p512
      $region54: #{tpu_custom_call.1} parent=5 // pred_check_branch
        %515 = sbr.rel (%p513) target = $region56
      $region55: #{tpu_custom_call.1} parent=5 // pred_region
        %s516 = ssub.s32 %s14, 2
        // Predicated region
        $region57: #{tpu_custom_call.1} parent=55 // pred_check
          %p517 = pneg %p180
        $region58: #{tpu_custom_call.1} parent=55 // pred_check_branch
          %519 = sbr.rel (%p517) target = $region60
        $region59: #{tpu_custom_call.1} parent=55 // pred_region
          %s520 = sand.u32 %s165, 1
          %s521 = scalar_lea.sflag [#allocation4], %s520
          %s522 = sand.u32 %s165, 1
          %s523 = smul.addr %s522, 16
          %s524 = scalar_lea.vmem [#allocation3], %s523
          %525 = dma.done %s521, 256
        $region60: #{tpu_custom_call.1} parent=55 // pred_fallthru
          _
      $region56: #{tpu_custom_call.1} parent=5 // pred_fallthru
        _
    $region6: #{tpu_custom_call.1} parent=1 // loop_footer
      %s18 = sadd.s32 1, %s14
    $region7: #{tpu_custom_call.1} parent=1 // loop_footer_branch
      %13 = sbr.rel target = $region3
    $region8: #{tpu_custom_call.1} parent=1 // loop_exit
      _
    %526 = vsyncpa [#allocation4], 1
    %s527 = scalar_lea.sflag [#allocation4], 1
    %528 = vsyncpa %s527, 1

</llo_original>
